<compile_context>
chip_gen: v7x
topology: tpu7x:2x2x1
jax: 0.10.0
libtpu: 0.0.40
codegen_flags: <defaults>
</compile_context>

<pallas_src>
import jax
import jax.numpy as jnp
from jax.experimental import pallas as pl
from jax.experimental.pallas import tpu as pltpu

# ---- Config (mirrors the PyTorch `Config`) ----
D_MODEL = 32
NUM_HEADS = 4
NUM_GROUPS = 2
DROPOUT = 0.0
POSITIONAL_EMBEDDING = "none"

D_K = D_MODEL // NUM_HEADS              # 8
NUM_KV_HEADS = NUM_HEADS // NUM_GROUPS  # 2  (GQA interpretation of split_heads on d_model/num_groups features)
D_KV = D_MODEL // NUM_GROUPS            # 16 (k_linear / v_linear output width)
D_QKV = D_MODEL + 2 * D_KV              # 64 (packed projection width)

BATCH = 2
SEQ = 8


def gqa_kernel(q_ref, k_ref, v_ref, wqkv_ref, bqkv_ref, wo_ref, bo_ref,
               out_ref, attn_ref, acc_ref):
    """One batch element per grid step. q/k/v refs are (S, D_MODEL)."""
    # ---- Fused QKV projection: one MXU matmul for all three projections. ----
    # q/k/v are distinct tensors, so they are stacked along rows; the unused
    # (row-block, column-block) combinations come for free at this size.
    x = jnp.concatenate([q_ref[...], k_ref[...], v_ref[...]], axis=0)     # (3S, D_MODEL)
    proj = jnp.dot(x, wqkv_ref[...],
                   preferred_element_type=jnp.float32) + bqkv_ref[...]    # (3S, D_QKV)

    qp = proj[:SEQ, :D_MODEL]                          # (S, D_MODEL); 1/sqrt(d_k) pre-folded
    kp = proj[SEQ:2 * SEQ, D_MODEL:D_MODEL + D_KV]     # (S, D_KV)
    vp = proj[2 * SEQ:, D_MODEL + D_KV:]               # (S, D_KV)

    # ---- Attention: one pass per KV head, query heads of the group stacked
    # along rows. torch's k.repeat(1, num_groups, 1, 1) tiles kv heads along
    # the head axis, so query head h uses kv head h % NUM_KV_HEADS. ----
    for g in range(NUM_KV_HEADS):
        q_g = jnp.concatenate(
            [qp[:, (g + j * NUM_KV_HEADS) * D_K:(g + j * NUM_KV_HEADS + 1) * D_K]
             for j in range(NUM_GROUPS)], axis=0)                          # (NUM_GROUPS*S, d_k)
        k_g = kp[:, g * D_K:(g + 1) * D_K]                                 # (S, d_k)
        v_g = vp[:, g * D_K:(g + 1) * D_K]                                 # (S, d_k)

        # QK^T contracting the last axes (no explicit transpose); scale folded into wq.
        s = jnp.einsum("qd,kd->qk", q_g, k_g,
                       preferred_element_type=jnp.float32)                 # (NUM_GROUPS*S, S)
        s = s - jnp.max(s, axis=-1, keepdims=True)
        e = jnp.exp(s)
        w = e * pl.reciprocal(jnp.sum(e, axis=-1, keepdims=True),
                              approx=False)                                # softmax

        pv = jnp.einsum("qk,kd->qd", w, v_g,
                        preferred_element_type=jnp.float32)                # (NUM_GROUPS*S, d_k)

        for j in range(NUM_GROUPS):
            h = g + j * NUM_KV_HEADS
            attn_ref[h] = w[j * SEQ:(j + 1) * SEQ, :]                      # direct (B,H,S,S) layout
            acc_ref[:, h * D_K:(h + 1) * D_K] = pv[j * SEQ:(j + 1) * SEQ, :]

    # ---- Output projection (dropout p = 0 -> identity). ----
    out_ref[...] = jnp.dot(acc_ref[...], wo_ref[...],
                           preferred_element_type=jnp.float32) + bo_ref[...]


def grouped_query_attention(q, k, v, packed_params):
    B, S, D = q.shape
    w_qkv, b_qkv, wo, bo = packed_params

    qkv_spec = pl.BlockSpec((None, S, D), lambda b: (b, 0, 0))

    def full(a):
        return pl.BlockSpec(a.shape, lambda b, _nd=a.ndim: (0,) * _nd)

    out, attn = pl.pallas_call(
        gqa_kernel,
        grid=(B,),
        in_specs=[qkv_spec, qkv_spec, qkv_spec,
                  full(w_qkv), full(b_qkv), full(wo), full(bo)],
        out_specs=(
            pl.BlockSpec((None, S, D), lambda b: (b, 0, 0)),
            pl.BlockSpec((None, NUM_HEADS, S, S), lambda b: (b, 0, 0, 0)),
        ),
        out_shape=(
            jax.ShapeDtypeStruct((B, S, D), jnp.float32),                  # attention output
            jax.ShapeDtypeStruct((B, NUM_HEADS, S, S), jnp.float32),       # attention weights
        ),
        scratch_shapes=[pltpu.VMEM((S, D), jnp.float32)],                  # per-head output assembly
        compiler_params=pltpu.CompilerParams(
            dimension_semantics=("parallel",)),                            # 2 TCs on v7x; loop on v5e/v6e
    )(q, k, v, w_qkv, b_qkv, wo, bo)
    return out, attn


def pack_params(params):
    """One-time static parameter transform: fused QKV weight + folded 1/sqrt(d_k)."""
    wq, bq, wk, bk, wv, bv, wo, bo = params
    scale = 1.0 / jnp.sqrt(jnp.float32(D_K))
    w_qkv = jnp.concatenate([wq * scale, wk, wv], axis=1)   # (D_MODEL, D_QKV)
    b_qkv = jnp.concatenate([bq * scale, bk, bv], axis=1)   # (1, D_QKV)
    return w_qkv, b_qkv, wo, bo


def reference_gqa(q, k, v, params):
    """Plain-JAX reference mirroring the PyTorch forward, for validation."""
    wq, bq, wk, bk, wv, bv, wo, bo = params
    B, S, D = q.shape
    qp = q @ wq + bq[0]
    kp = k @ wk + bk[0]
    vp = v @ wv + bv[0]
    qh = qp.reshape(B, S, NUM_HEADS, D_K).transpose(0, 2, 1, 3)
    kh = kp.reshape(B, S, NUM_KV_HEADS, D_K).transpose(0, 2, 1, 3)
    vh = vp.reshape(B, S, NUM_KV_HEADS, D_K).transpose(0, 2, 1, 3)
    kh = jnp.tile(kh, (1, NUM_GROUPS, 1, 1))
    vh = jnp.tile(vh, (1, NUM_GROUPS, 1, 1))
    scores = jnp.einsum("bhqd,bhkd->bhqk", qh, kh) / jnp.sqrt(jnp.float32(D_K))
    w = jax.nn.softmax(scores, axis=-1)
    o = jnp.einsum("bhqk,bhkd->bhqd", w, vh)
    o = o.transpose(0, 2, 1, 3).reshape(B, S, D)
    return o @ wo + bo[0], w


def init_params(key):
    ks = jax.random.split(key, 8)
    scale = 0.1
    wq = scale * jax.random.normal(ks[0], (D_MODEL, D_MODEL), jnp.float32)
    bq = scale * jax.random.normal(ks[1], (1, D_MODEL), jnp.float32)
    wk = scale * jax.random.normal(ks[2], (D_MODEL, D_KV), jnp.float32)
    bk = scale * jax.random.normal(ks[3], (1, D_KV), jnp.float32)
    wv = scale * jax.random.normal(ks[4], (D_MODEL, D_KV), jnp.float32)
    bv = scale * jax.random.normal(ks[5], (1, D_KV), jnp.float32)
    wo = scale * jax.random.normal(ks[6], (D_MODEL, D_MODEL), jnp.float32)
    bo = scale * jax.random.normal(ks[7], (1, D_MODEL), jnp.float32)
    return (wq, bq, wk, bk, wv, bv, wo, bo)


if __name__ == "__main__":
    key = jax.random.PRNGKey(0)
    kq, kk, kv, kp = jax.random.split(key, 4)
    q = jax.random.normal(kq, (BATCH, SEQ, D_MODEL), jnp.float32)
    k = jax.random.normal(kk, (BATCH, SEQ, D_MODEL), jnp.float32)
    v = jax.random.normal(kv, (BATCH, SEQ, D_MODEL), jnp.float32)
    params = init_params(kp)
    packed = pack_params(params)

    out, attn_w = grouped_query_attention(q, k, v, packed)
    out = jax.block_until_ready(out)
    attn_w = jax.block_until_ready(attn_w)

    ref_out, ref_w = reference_gqa(q, k, v, params)
    assert out.shape == (BATCH, SEQ, D_MODEL)
    assert attn_w.shape == (BATCH, NUM_HEADS, SEQ, SEQ)
    assert jnp.allclose(out, ref_out, atol=1e-4, rtol=1e-4)
    assert jnp.allclose(attn_w, ref_w, atol=1e-5, rtol=1e-4)

    print("KERNEL_OK")
</pallas_src>

<mosaic_0001>
module attributes {stable_mosaic.version = 11 : i64} {
  func.func @gqa_kernel(%arg0: i32, %arg1: memref<1x8x32xf32, #tpu.memory_space<vmem>>, %arg2: memref<1x8x32xf32, #tpu.memory_space<vmem>>, %arg3: memref<1x8x32xf32, #tpu.memory_space<vmem>>, %arg4: memref<32x64xf32, #tpu.memory_space<vmem>>, %arg5: memref<1x64xf32, #tpu.memory_space<vmem>>, %arg6: memref<32x32xf32, #tpu.memory_space<vmem>>, %arg7: memref<1x32xf32, #tpu.memory_space<vmem>>, %arg8: memref<1x8x32xf32, #tpu.memory_space<vmem>>, %arg9: memref<1x4x8x8xf32, #tpu.memory_space<vmem>>, %arg10: memref<8x32xf32, #tpu.memory_space<vmem>>) attributes {dimension_semantics = [#tpu.dimension_semantics<parallel>], iteration_bounds = array<i64: 2>, scalar_prefetch = 0 : i64, scratch_operands = 1 : i64, tpu.core_type = #tpu.core_type<tc>, window_params = [{transform_indices = @transform_0, window_bounds = array<i64: 1, 8, 32>}, {transform_indices = @transform_1, window_bounds = array<i64: 1, 8, 32>}, {transform_indices = @transform_2, window_bounds = array<i64: 1, 8, 32>}, {pipeline_mode = #tpu.pipeline_mode<synchronous>, transform_indices = @transform_3, window_bounds = array<i64: 32, 64>}, {pipeline_mode = #tpu.pipeline_mode<synchronous>, transform_indices = @transform_4, window_bounds = array<i64: 1, 64>}, {pipeline_mode = #tpu.pipeline_mode<synchronous>, transform_indices = @transform_5, window_bounds = array<i64: 32, 32>}, {pipeline_mode = #tpu.pipeline_mode<synchronous>, transform_indices = @transform_6, window_bounds = array<i64: 1, 32>}, {transform_indices = @transform_7, window_bounds = array<i64: 1, 8, 32>}, {transform_indices = @transform_8, window_bounds = array<i64: 1, 4, 8, 8>}]} {
    %c0 = arith.constant 0 : index
    %c0_0 = arith.constant 0 : index
    %c0_1 = arith.constant 0 : index
    %0 = vector.load %arg1[%c0, %c0_0, %c0_1] : memref<1x8x32xf32, #tpu.memory_space<vmem>>, vector<1x8x32xf32>
    %1 = vector.shape_cast %0 : vector<1x8x32xf32> to vector<8x32xf32>
    %c0_2 = arith.constant 0 : index
    %c0_3 = arith.constant 0 : index
    %c0_4 = arith.constant 0 : index
    %2 = vector.load %arg2[%c0_2, %c0_3, %c0_4] : memref<1x8x32xf32, #tpu.memory_space<vmem>>, vector<1x8x32xf32>
    %3 = vector.shape_cast %2 : vector<1x8x32xf32> to vector<8x32xf32>
    %c0_5 = arith.constant 0 : index
    %c0_6 = arith.constant 0 : index
    %c0_7 = arith.constant 0 : index
    %4 = vector.load %arg3[%c0_5, %c0_6, %c0_7] : memref<1x8x32xf32, #tpu.memory_space<vmem>>, vector<1x8x32xf32>
    %5 = vector.shape_cast %4 : vector<1x8x32xf32> to vector<8x32xf32>
    %6 = tpu.concatenate %1, %3, %5 in 0 : vector<8x32xf32>, vector<8x32xf32>, vector<8x32xf32> -> vector<24x32xf32>
    %c0_8 = arith.constant 0 : index
    %c0_9 = arith.constant 0 : index
    %7 = vector.load %arg4[%c0_8, %c0_9] : memref<32x64xf32, #tpu.memory_space<vmem>>, vector<32x64xf32>
    %cst = arith.constant dense<0.000000e+00> : vector<24x64xf32>
    %8 = tpu.matmul %6, %7, %cst {dimension_numbers = #tpu.dot_dimension_numbers<[1], [0], [0], [1], [0, 0, 1, 1], [], []>} : vector<24x32xf32>, vector<32x64xf32>, vector<24x64xf32> -> vector<24x64xf32>
    %c0_10 = arith.constant 0 : index
    %c0_11 = arith.constant 0 : index
    %9 = vector.load %arg5[%c0_10, %c0_11] : memref<1x64xf32, #tpu.memory_space<vmem>>, vector<1x64xf32>
    %10 = vector.broadcast %9 : vector<1x64xf32> to vector<24x64xf32>
    %11 = arith.addf %8, %10 : vector<24x64xf32>
    %12 = vector.extract_strided_slice %11 {offsets = [0, 0], sizes = [8, 32], strides = [1, 1]} : vector<24x64xf32> to vector<8x32xf32>
    %13 = vector.extract_strided_slice %11 {offsets = [8, 32], sizes = [8, 16], strides = [1, 1]} : vector<24x64xf32> to vector<8x16xf32>
    %14 = vector.extract_strided_slice %11 {offsets = [16, 48], sizes = [8, 16], strides = [1, 1]} : vector<24x64xf32> to vector<8x16xf32>
    %15 = vector.extract_strided_slice %12 {offsets = [0, 0], sizes = [8, 8], strides = [1, 1]} : vector<8x32xf32> to vector<8x8xf32>
    %16 = vector.extract_strided_slice %12 {offsets = [0, 16], sizes = [8, 8], strides = [1, 1]} : vector<8x32xf32> to vector<8x8xf32>
    %17 = tpu.concatenate %15, %16 in 0 : vector<8x8xf32>, vector<8x8xf32> -> vector<16x8xf32>
    %18 = vector.extract_strided_slice %13 {offsets = [0, 0], sizes = [8, 8], strides = [1, 1]} : vector<8x16xf32> to vector<8x8xf32>
    %19 = vector.extract_strided_slice %14 {offsets = [0, 0], sizes = [8, 8], strides = [1, 1]} : vector<8x16xf32> to vector<8x8xf32>
    "tpu.trace_start"() <{level = 10 : i32, message = "qd,kd->qk"}> : () -> ()
    %cst_12 = arith.constant dense<0.000000e+00> : vector<16x8xf32>
    %20 = tpu.matmul %17, %18, %cst_12 {dimension_numbers = #tpu.dot_dimension_numbers<[1], [1], [0], [0], [0, 0, 1, 0], [], []>} : vector<16x8xf32>, vector<8x8xf32>, vector<16x8xf32> -> vector<16x8xf32>
    "tpu.trace_stop"() : () -> ()
    %cst_13 = arith.constant dense<0xFF800000> : vector<16xf32>
    %21 = vector.multi_reduction <maximumf>, %20, %cst_13 [1] : vector<16x8xf32> to vector<16xf32>
    %22 = vector.shape_cast %21 : vector<16xf32> to vector<16x1xf32>
    %23 = vector.broadcast %22 : vector<16x1xf32> to vector<16x8xf32>
    %24 = arith.subf %20, %23 : vector<16x8xf32>
    %25 = math.exp %24 : vector<16x8xf32>
    %cst_14 = arith.constant dense<0.000000e+00> : vector<16xf32>
    %26 = vector.multi_reduction <add>, %25, %cst_14 [1] : vector<16x8xf32> to vector<16xf32>
    %27 = vector.shape_cast %26 : vector<16xf32> to vector<16x1xf32>
    %28 = tpu.reciprocal %27 : vector<16x1xf32> -> vector<16x1xf32>
    %29 = vector.broadcast %28 : vector<16x1xf32> to vector<16x8xf32>
    %30 = arith.mulf %25, %29 : vector<16x8xf32>
    "tpu.trace_start"() <{level = 10 : i32, message = "qk,kd->qd"}> : () -> ()
    %cst_15 = arith.constant dense<0.000000e+00> : vector<16x8xf32>
    %31 = tpu.matmul %30, %19, %cst_15 {dimension_numbers = #tpu.dot_dimension_numbers<[1], [0], [0], [1], [0, 0, 1, 1], [], []>} : vector<16x8xf32>, vector<8x8xf32>, vector<16x8xf32> -> vector<16x8xf32>
    "tpu.trace_stop"() : () -> ()
    %32 = vector.extract_strided_slice %30 {offsets = [0, 0], sizes = [8, 8], strides = [1, 1]} : vector<16x8xf32> to vector<8x8xf32>
    %c0_16 = arith.constant 0 : index
    %c0_17 = arith.constant 0 : index
    %c0_18 = arith.constant 0 : index
    %c0_19 = arith.constant 0 : index
    %33 = vector.load %arg9[%c0_16, %c0_17, %c0_18, %c0_19] : memref<1x4x8x8xf32, #tpu.memory_space<vmem>>, vector<1x1x8x8xf32>
    %34 = vector.shape_cast %33 : vector<1x1x8x8xf32> to vector<8x8xf32>
    %35 = vector.shape_cast %32 : vector<8x8xf32> to vector<1x1x8x8xf32>
    tpu.vector_store %arg9[%c0_16, %c0_17, %c0_18, %c0_19], %35 {strides = array<i32>} : memref<1x4x8x8xf32, #tpu.memory_space<vmem>>, vector<1x1x8x8xf32>,
    %36 = vector.extract_strided_slice %31 {offsets = [0, 0], sizes = [8, 8], strides = [1, 1]} : vector<16x8xf32> to vector<8x8xf32>
    %c0_20 = arith.constant 0 : index
    %c0_21 = arith.constant 0 : index
    %37 = vector.load %arg10[%c0_20, %c0_21] : memref<8x32xf32, #tpu.memory_space<vmem>>, vector<8x8xf32>
    tpu.vector_store %arg10[%c0_20, %c0_21], %36 {strides = array<i32>} : memref<8x32xf32, #tpu.memory_space<vmem>>, vector<8x8xf32>,
    %38 = vector.extract_strided_slice %30 {offsets = [8, 0], sizes = [8, 8], strides = [1, 1]} : vector<16x8xf32> to vector<8x8xf32>
    %c0_22 = arith.constant 0 : index
    %c2 = arith.constant 2 : index
    %c0_23 = arith.constant 0 : index
    %c0_24 = arith.constant 0 : index
    %39 = vector.load %arg9[%c0_22, %c2, %c0_23, %c0_24] : memref<1x4x8x8xf32, #tpu.memory_space<vmem>>, vector<1x1x8x8xf32>
    %40 = vector.shape_cast %39 : vector<1x1x8x8xf32> to vector<8x8xf32>
    %41 = vector.shape_cast %38 : vector<8x8xf32> to vector<1x1x8x8xf32>
    tpu.vector_store %arg9[%c0_22, %c2, %c0_23, %c0_24], %41 {strides = array<i32>} : memref<1x4x8x8xf32, #tpu.memory_space<vmem>>, vector<1x1x8x8xf32>,
    %42 = vector.extract_strided_slice %31 {offsets = [8, 0], sizes = [8, 8], strides = [1, 1]} : vector<16x8xf32> to vector<8x8xf32>
    %c0_25 = arith.constant 0 : index
    %c16 = arith.constant 16 : index
    %43 = vector.load %arg10[%c0_25, %c16] : memref<8x32xf32, #tpu.memory_space<vmem>>, vector<8x8xf32>
    tpu.vector_store %arg10[%c0_25, %c16], %42 {strides = array<i32>} : memref<8x32xf32, #tpu.memory_space<vmem>>, vector<8x8xf32>,
    %44 = vector.extract_strided_slice %12 {offsets = [0, 8], sizes = [8, 8], strides = [1, 1]} : vector<8x32xf32> to vector<8x8xf32>
    %45 = vector.extract_strided_slice %12 {offsets = [0, 24], sizes = [8, 8], strides = [1, 1]} : vector<8x32xf32> to vector<8x8xf32>
    %46 = tpu.concatenate %44, %45 in 0 : vector<8x8xf32>, vector<8x8xf32> -> vector<16x8xf32>
    %47 = vector.extract_strided_slice %13 {offsets = [0, 8], sizes = [8, 8], strides = [1, 1]} : vector<8x16xf32> to vector<8x8xf32>
    %48 = vector.extract_strided_slice %14 {offsets = [0, 8], sizes = [8, 8], strides = [1, 1]} : vector<8x16xf32> to vector<8x8xf32>
    "tpu.trace_start"() <{level = 10 : i32, message = "qd,kd->qk"}> : () -> ()
    %cst_26 = arith.constant dense<0.000000e+00> : vector<16x8xf32>
    %49 = tpu.matmul %46, %47, %cst_26 {dimension_numbers = #tpu.dot_dimension_numbers<[1], [1], [0], [0], [0, 0, 1, 0], [], []>} : vector<16x8xf32>, vector<8x8xf32>, vector<16x8xf32> -> vector<16x8xf32>
    "tpu.trace_stop"() : () -> ()
    %cst_27 = arith.constant dense<0xFF800000> : vector<16xf32>
    %50 = vector.multi_reduction <maximumf>, %49, %cst_27 [1] : vector<16x8xf32> to vector<16xf32>
    %51 = vector.shape_cast %50 : vector<16xf32> to vector<16x1xf32>
    %52 = vector.broadcast %51 : vector<16x1xf32> to vector<16x8xf32>
    %53 = arith.subf %49, %52 : vector<16x8xf32>
    %54 = math.exp %53 : vector<16x8xf32>
    %cst_28 = arith.constant dense<0.000000e+00> : vector<16xf32>
    %55 = vector.multi_reduction <add>, %54, %cst_28 [1] : vector<16x8xf32> to vector<16xf32>
    %56 = vector.shape_cast %55 : vector<16xf32> to vector<16x1xf32>
    %57 = tpu.reciprocal %56 : vector<16x1xf32> -> vector<16x1xf32>
    %58 = vector.broadcast %57 : vector<16x1xf32> to vector<16x8xf32>
    %59 = arith.mulf %54, %58 : vector<16x8xf32>
    "tpu.trace_start"() <{level = 10 : i32, message = "qk,kd->qd"}> : () -> ()
    %cst_29 = arith.constant dense<0.000000e+00> : vector<16x8xf32>
    %60 = tpu.matmul %59, %48, %cst_29 {dimension_numbers = #tpu.dot_dimension_numbers<[1], [0], [0], [1], [0, 0, 1, 1], [], []>} : vector<16x8xf32>, vector<8x8xf32>, vector<16x8xf32> -> vector<16x8xf32>
    "tpu.trace_stop"() : () -> ()
    %61 = vector.extract_strided_slice %59 {offsets = [0, 0], sizes = [8, 8], strides = [1, 1]} : vector<16x8xf32> to vector<8x8xf32>
    %c0_30 = arith.constant 0 : index
    %c1 = arith.constant 1 : index
    %c0_31 = arith.constant 0 : index
    %c0_32 = arith.constant 0 : index
    %62 = vector.load %arg9[%c0_30, %c1, %c0_31, %c0_32] : memref<1x4x8x8xf32, #tpu.memory_space<vmem>>, vector<1x1x8x8xf32>
    %63 = vector.shape_cast %62 : vector<1x1x8x8xf32> to vector<8x8xf32>
    %64 = vector.shape_cast %61 : vector<8x8xf32> to vector<1x1x8x8xf32>
    tpu.vector_store %arg9[%c0_30, %c1, %c0_31, %c0_32], %64 {strides = array<i32>} : memref<1x4x8x8xf32, #tpu.memory_space<vmem>>, vector<1x1x8x8xf32>,
    %65 = vector.extract_strided_slice %60 {offsets = [0, 0], sizes = [8, 8], strides = [1, 1]} : vector<16x8xf32> to vector<8x8xf32>
    %c0_33 = arith.constant 0 : index
    %c8 = arith.constant 8 : index
    %66 = vector.load %arg10[%c0_33, %c8] : memref<8x32xf32, #tpu.memory_space<vmem>>, vector<8x8xf32>
    tpu.vector_store %arg10[%c0_33, %c8], %65 {strides = array<i32>} : memref<8x32xf32, #tpu.memory_space<vmem>>, vector<8x8xf32>,
    %67 = vector.extract_strided_slice %59 {offsets = [8, 0], sizes = [8, 8], strides = [1, 1]} : vector<16x8xf32> to vector<8x8xf32>
    %c0_34 = arith.constant 0 : index
    %c3 = arith.constant 3 : index
    %c0_35 = arith.constant 0 : index
    %c0_36 = arith.constant 0 : index
    %68 = vector.load %arg9[%c0_34, %c3, %c0_35, %c0_36] : memref<1x4x8x8xf32, #tpu.memory_space<vmem>>, vector<1x1x8x8xf32>
    %69 = vector.shape_cast %68 : vector<1x1x8x8xf32> to vector<8x8xf32>
    %70 = vector.shape_cast %67 : vector<8x8xf32> to vector<1x1x8x8xf32>
    tpu.vector_store %arg9[%c0_34, %c3, %c0_35, %c0_36], %70 {strides = array<i32>} : memref<1x4x8x8xf32, #tpu.memory_space<vmem>>, vector<1x1x8x8xf32>,
    %71 = vector.extract_strided_slice %60 {offsets = [8, 0], sizes = [8, 8], strides = [1, 1]} : vector<16x8xf32> to vector<8x8xf32>
    %c0_37 = arith.constant 0 : index
    %c24 = arith.constant 24 : index
    %72 = vector.load %arg10[%c0_37, %c24] : memref<8x32xf32, #tpu.memory_space<vmem>>, vector<8x8xf32>
    tpu.vector_store %arg10[%c0_37, %c24], %71 {strides = array<i32>} : memref<8x32xf32, #tpu.memory_space<vmem>>, vector<8x8xf32>,
    %c0_38 = arith.constant 0 : index
    %c0_39 = arith.constant 0 : index
    %73 = vector.load %arg10[%c0_38, %c0_39] : memref<8x32xf32, #tpu.memory_space<vmem>>, vector<8x32xf32>
    %c0_40 = arith.constant 0 : index
    %c0_41 = arith.constant 0 : index
    %74 = vector.load %arg6[%c0_40, %c0_41] : memref<32x32xf32, #tpu.memory_space<vmem>>, vector<32x32xf32>
    %cst_42 = arith.constant dense<0.000000e+00> : vector<8x32xf32>
    %75 = tpu.matmul %73, %74, %cst_42 {dimension_numbers = #tpu.dot_dimension_numbers<[1], [0], [0], [1], [0, 0, 1, 1], [], []>} : vector<8x32xf32>, vector<32x32xf32>, vector<8x32xf32> -> vector<8x32xf32>
    %c0_43 = arith.constant 0 : index
    %c0_44 = arith.constant 0 : index
    %76 = vector.load %arg7[%c0_43, %c0_44] : memref<1x32xf32, #tpu.memory_space<vmem>>, vector<1x32xf32>
    %77 = vector.broadcast %76 : vector<1x32xf32> to vector<8x32xf32>
    %78 = arith.addf %75, %77 : vector<8x32xf32>
    %c0_45 = arith.constant 0 : index
    %c0_46 = arith.constant 0 : index
    %c0_47 = arith.constant 0 : index
    %79 = vector.load %arg8[%c0_45, %c0_46, %c0_47] : memref<1x8x32xf32, #tpu.memory_space<vmem>>, vector<1x8x32xf32>
    %80 = vector.shape_cast %79 : vector<1x8x32xf32> to vector<8x32xf32>
    %81 = vector.shape_cast %78 : vector<8x32xf32> to vector<1x8x32xf32>
    tpu.vector_store %arg8[%c0_45, %c0_46, %c0_47], %81 {strides = array<i32>} : memref<1x8x32xf32, #tpu.memory_space<vmem>>, vector<1x8x32xf32>,
    return
  }
  func.func @transform_0(%arg0: i32) -> (i32, i32, i32) {
    %c0_i32 = arith.constant 0 : i32
    %c0_i32_0 = arith.constant 0 : i32
    %c0_i32_1 = arith.constant 0 : i32
    return %arg0, %c0_i32, %c0_i32_0 : i32, i32, i32
  }
  func.func @transform_1(%arg0: i32) -> (i32, i32, i32) {
    %c0_i32 = arith.constant 0 : i32
    %c0_i32_0 = arith.constant 0 : i32
    %c0_i32_1 = arith.constant 0 : i32
    return %arg0, %c0_i32, %c0_i32_0 : i32, i32, i32
  }
  func.func @transform_2(%arg0: i32) -> (i32, i32, i32) {
    %c0_i32 = arith.constant 0 : i32
    %c0_i32_0 = arith.constant 0 : i32
    %c0_i32_1 = arith.constant 0 : i32
    return %arg0, %c0_i32, %c0_i32_0 : i32, i32, i32
  }
  func.func @transform_3(%arg0: i32) -> (i32, i32) {
    %c0_i32 = arith.constant 0 : i32
    %c0_i32_0 = arith.constant 0 : i32
    %c0_i32_1 = arith.constant 0 : i32
    return %c0_i32, %c0_i32_0 : i32, i32
  }
  func.func @transform_4(%arg0: i32) -> (i32, i32) {
    %c0_i32 = arith.constant 0 : i32
    %c0_i32_0 = arith.constant 0 : i32
    %c0_i32_1 = arith.constant 0 : i32
    return %c0_i32, %c0_i32_0 : i32, i32
  }
  func.func @transform_5(%arg0: i32) -> (i32, i32) {
    %c0_i32 = arith.constant 0 : i32
    %c0_i32_0 = arith.constant 0 : i32
    %c0_i32_1 = arith.constant 0 : i32
    return %c0_i32, %c0_i32_0 : i32, i32
  }
  func.func @transform_6(%arg0: i32) -> (i32, i32) {
    %c0_i32 = arith.constant 0 : i32
    %c0_i32_0 = arith.constant 0 : i32
    %c0_i32_1 = arith.constant 0 : i32
    return %c0_i32, %c0_i32_0 : i32, i32
  }
  func.func @transform_7(%arg0: i32) -> (i32, i32, i32) {
    %c0_i32 = arith.constant 0 : i32
    %c0_i32_0 = arith.constant 0 : i32
    %c0_i32_1 = arith.constant 0 : i32
    return %arg0, %c0_i32, %c0_i32_0 : i32, i32, i32
  }
  func.func @transform_8(%arg0: i32) -> (i32, i32, i32, i32) {
    %c0_i32 = arith.constant 0 : i32
    %c0_i32_0 = arith.constant 0 : i32
    %c0_i32_1 = arith.constant 0 : i32
    %c0_i32_2 = arith.constant 0 : i32
    return %arg0, %c0_i32, %c0_i32_0, %c0_i32_1 : i32, i32, i32, i32
  }
}

</mosaic_0001>

<llo_original>
// kernel: tpu_custom_call.1
$region0: #{tpu_custom_call.1}
  #allocation0 [shape = 'u32[]', space=smem, size = 0x4, offset = 0x4, fixed_abs, tag = 'smem constant byte address 0x4 - core index']
  #allocation1 [shape = 'u32[144,128]{1,0:T(1,128)}', space=vmem, size = 0x12000, scoped, tag = 'internal scratch']
  #allocation2 [shape = 'f32[8,32]{1,0:T(8,128)}', space=vmem, size = 0x1000, scoped, tag = 'scratch operand']
  %s0 = inlined_call_operand.hbm [shape: f32[2,8,32], index: 0, kind: input, shape index: {}]
  %s1 = inlined_call_operand.hbm [shape: f32[2,8,32], index: 1, kind: input, shape index: {}]
  %s2 = inlined_call_operand.hbm [shape: f32[2,8,32], index: 2, kind: input, shape index: {}]
  %s3 = inlined_call_operand.hbm [shape: f32[32,64], index: 3, kind: input, shape index: {}]
  %s4 = inlined_call_operand.vmem [shape: f32[1,64], index: 4, kind: input, shape index: {}]
  %s5 = inlined_call_operand.hbm [shape: f32[32,32], index: 5, kind: input, shape index: {}]
  %s6 = inlined_call_operand.vmem [shape: f32[1,32], index: 6, kind: input, shape index: {}]
  %s7 = inlined_call_operand.hbm [shape: f32[2,8,32], index: 7, kind: output, shape index: {0}]
  %s8 = inlined_call_operand.hbm [shape: f32[2,4,8,8], index: 8, kind: output, shape index: {1}]
  %9 = xla_tuple %s7, %s8
  %s10 = sld [smem:[#allocation0]]
  $region89: #{tpu_custom_call.1} parent=0
    _
  %s12 = ssub.s32 1, %s10
  %s13 = scalar_select 0, %s12, %s10
  $region1: #{tpu_custom_call.1} parent=0
    #allocation3 [shape = 'u8[8192]{0}', space=vmem, size = 0x2000, scoped, tag = 'input window, operand 0']
    #allocation4 [shape = 's32[2]{0}', space=sflag, size = 0x8, scoped, tag = 'scoped memory for tpu_custom_call.1']
    #allocation5 [shape = 's32[2]{0}', space=sflag, size = 0x8, scoped, tag = 'scoped memory for tpu_custom_call.1']
    #allocation6 [shape = 'u8[8192]{0}', space=vmem, size = 0x2000, scoped, tag = 'input window, operand 1']
    #allocation7 [shape = 's32[2]{0}', space=sflag, size = 0x8, scoped, tag = 'scoped memory for tpu_custom_call.1']
    #allocation8 [shape = 'u8[8192]{0}', space=vmem, size = 0x2000, scoped, tag = 'input window, operand 2']
    #allocation9 [shape = 'u8[16384]{0}', space=vmem, size = 0x4000, scoped, tag = 'input window, operand 3, single buffered']
    #allocation10 [shape = 's32[1]{0}', space=sflag, size = 0x4, scoped, tag = 'scoped memory for tpu_custom_call.1']
    #allocation11 [shape = 'u8[16384]{0}', space=vmem, size = 0x4000, scoped, tag = 'input window, operand 5, single buffered']
    #allocation12 [shape = 'u8[8192]{0}', space=vmem, size = 0x2000, scoped, tag = 'output window, operand 0']
    #allocation13 [shape = 'u8[32768]{0}', space=vmem, size = 0x8000, scoped, tag = 'output window, operand 1']
    #allocation14 [shape = 's32[2]{0}', space=sflag, size = 0x8, scoped, tag = 'scoped memory for tpu_custom_call.1']
    %14 = vsyncpa [#allocation4], 0
    %s15 = scalar_lea.sflag [#allocation4], 1
    %16 = vsyncpa %s15, 0
    %17 = vsyncpa [#allocation7], 0
    %s18 = scalar_lea.sflag [#allocation7], 1
    %19 = vsyncpa %s18, 0
    %20 = vsyncpa [#allocation10], 0
    %21 = vsyncpa [#allocation5], 0
    %s22 = scalar_lea.sflag [#allocation5], 1
    %23 = vsyncpa %s22, 0
    %24 = vsyncpa [#allocation14], 0
    %s25 = scalar_lea.sflag [#allocation14], 1
    %26 = vsyncpa %s25, 0
    loop: start=0, step=1, limit=4
    $region2: #{tpu_custom_call.1} parent=1 // loop_pre_header
      _
    $region3: #{tpu_custom_call.1} parent=1 // loop_header
      %s28 = sphi 0, %s32
      %p29 = scmp.ge.s32.totalorder %s28, 4
      %s38 = sphi 0, %s40
      %s41 = sphi 0, %s38
      %s42 = sphi 0, %s41
      %s58 = sphi 0, %s42
      %s64 = sphi 0, %s66
      %s67 = sphi 0, %s64
      %s68 = sphi 0, %s67
      %s84 = sphi 0, %s68
      %s90 = sphi 0, %s92
      %s93 = sphi 0, %s90
      %s94 = sphi 0, %s93
      %s110 = sphi 0, %s94
      %s114 = sphi 0, %s114
      %s116 = sphi 0, %s114
      %s117 = sphi 0, %s116
      %s131 = sphi 0, %s117
      %s135 = sphi 0, %s135
      %s137 = sphi 0, %s135
      %s138 = sphi 0, %s137
      %s152 = sphi 0, %s138
      %s156 = sphi 0, %s156
      %s158 = sphi 0, %s156
      %s159 = sphi 0, %s158
      %s173 = sphi 0, %s159
      %s177 = sphi 0, %s177
      %s179 = sphi 0, %s177
      %s180 = sphi 0, %s179
      %s194 = sphi 0, %s180
      %s200 = sphi 0, %s202
      %s203 = sphi 0, %s200
      %s204 = sphi 0, %s203
      %s220 = sphi 0, %s204
      %s226 = sphi 0, %s228
      %s229 = sphi 0, %s226
      %s230 = sphi 0, %s229
      %s246 = sphi 0, %s230
    $region4: #{tpu_custom_call.1} parent=1 // loop_header_branch
      %31 = sbr.rel (%p29) target = $region8
    $region5: #{tpu_custom_call.1} parent=1 // loop_body
      %s33 = ssub.s32 %s28, 1
      %s34 = ssub.s32 %s28, 2
      %s35 = sadd.s32 %s28, 1
      %s36 = ssub.s32 %s28, %s35
      %p37 = scmp.eq.s32.totalorder %s36, 0
      %s39 = sadd.s32 %s38, 1
      %s40 = scalar_select %p37, %s38, %s39
      %p43 = pneg %p37
      %p44 = scmp.eq.s32.totalorder %s28, 1
      %p45 = por %p43, %p44
      %p46 = scmp.ne.s32.totalorder %s38, %s41
      %p47 = scmp.eq.s32.totalorder %s28, 0
      %p48 = por %p46, %p47
      %p49 = scmp.ne.s32.totalorder %s38, %s41
      %p50 = scmp.eq.s32.totalorder %s33, 1
      %p51 = por %p49, %p50
      %p52 = scmp.ne.s32.totalorder %s41, %s42
      %p53 = scmp.eq.s32.totalorder %s33, 0
      %p54 = por %p52, %p53
      %p55 = scmp.ne.s32.totalorder %s41, %s42
      %p56 = scmp.eq.s32.totalorder %s34, 1
      %p57 = por %p55, %p56
      %p59 = scmp.ne.s32.totalorder %s42, %s58
      %p60 = scmp.eq.s32.totalorder %s34, 0
      %p61 = por %p59, %p60
      %s62 = ssub.s32 %s28, %s35
      %p63 = scmp.eq.s32.totalorder %s62, 0
      %s65 = sadd.s32 %s64, 1
      %s66 = scalar_select %p63, %s64, %s65
      %p69 = pneg %p63
      %p70 = scmp.eq.s32.totalorder %s28, 1
      %p71 = por %p69, %p70
      %p72 = scmp.ne.s32.totalorder %s64, %s67
      %p73 = scmp.eq.s32.totalorder %s28, 0
      %p74 = por %p72, %p73
      %p75 = scmp.ne.s32.totalorder %s64, %s67
      %p76 = scmp.eq.s32.totalorder %s33, 1
      %p77 = por %p75, %p76
      %p78 = scmp.ne.s32.totalorder %s67, %s68
      %p79 = scmp.eq.s32.totalorder %s33, 0
      %p80 = por %p78, %p79
      %p81 = scmp.ne.s32.totalorder %s67, %s68
      %p82 = scmp.eq.s32.totalorder %s34, 1
      %p83 = por %p81, %p82
      %p85 = scmp.ne.s32.totalorder %s68, %s84
      %p86 = scmp.eq.s32.totalorder %s34, 0
      %p87 = por %p85, %p86
      %s88 = ssub.s32 %s28, %s35
      %p89 = scmp.eq.s32.totalorder %s88, 0
      %s91 = sadd.s32 %s90, 1
      %s92 = scalar_select %p89, %s90, %s91
      %p95 = pneg %p89
      %p96 = scmp.eq.s32.totalorder %s28, 1
      %p97 = por %p95, %p96
      %p98 = scmp.ne.s32.totalorder %s90, %s93
      %p99 = scmp.eq.s32.totalorder %s28, 0
      %p100 = por %p98, %p99
      %p101 = scmp.ne.s32.totalorder %s90, %s93
      %p102 = scmp.eq.s32.totalorder %s33, 1
      %p103 = por %p101, %p102
      %p104 = scmp.ne.s32.totalorder %s93, %s94
      %p105 = scmp.eq.s32.totalorder %s33, 0
      %p106 = por %p104, %p105
      %p107 = scmp.ne.s32.totalorder %s93, %s94
      %p108 = scmp.eq.s32.totalorder %s34, 1
      %p109 = por %p107, %p108
      %p111 = scmp.ne.s32.totalorder %s94, %s110
      %p112 = scmp.eq.s32.totalorder %s34, 0
      %p113 = por %p111, %p112
      %s115 = sadd.s32 %s114, 1
      %p118 = scmp.eq.s32.totalorder %s28, 1
      %p119 = scmp.ne.s32.totalorder %s114, %s116
      %p120 = scmp.eq.s32.totalorder %s28, 0
      %p121 = por %p119, %p120
      %p122 = scmp.ne.s32.totalorder %s114, %s116
      %p123 = scmp.eq.s32.totalorder %s33, 1
      %p124 = por %p122, %p123
      %p125 = scmp.ne.s32.totalorder %s116, %s117
      %p126 = scmp.eq.s32.totalorder %s33, 0
      %p127 = por %p125, %p126
      %p128 = scmp.ne.s32.totalorder %s116, %s117
      %p129 = scmp.eq.s32.totalorder %s34, 1
      %p130 = por %p128, %p129
      %p132 = scmp.ne.s32.totalorder %s117, %s131
      %p133 = scmp.eq.s32.totalorder %s34, 0
      %p134 = por %p132, %p133
      %s136 = sadd.s32 %s135, 1
      %p139 = scmp.eq.s32.totalorder %s28, 1
      %p140 = scmp.ne.s32.totalorder %s135, %s137
      %p141 = scmp.eq.s32.totalorder %s28, 0
      %p142 = por %p140, %p141
      %p143 = scmp.ne.s32.totalorder %s135, %s137
      %p144 = scmp.eq.s32.totalorder %s33, 1
      %p145 = por %p143, %p144
      %p146 = scmp.ne.s32.totalorder %s137, %s138
      %p147 = scmp.eq.s32.totalorder %s33, 0
      %p148 = por %p146, %p147
      %p149 = scmp.ne.s32.totalorder %s137, %s138
      %p150 = scmp.eq.s32.totalorder %s34, 1
      %p151 = por %p149, %p150
      %p153 = scmp.ne.s32.totalorder %s138, %s152
      %p154 = scmp.eq.s32.totalorder %s34, 0
      %p155 = por %p153, %p154
      %s157 = sadd.s32 %s156, 1
      %p160 = scmp.eq.s32.totalorder %s28, 1
      %p161 = scmp.ne.s32.totalorder %s156, %s158
      %p162 = scmp.eq.s32.totalorder %s28, 0
      %p163 = por %p161, %p162
      %p164 = scmp.ne.s32.totalorder %s156, %s158
      %p165 = scmp.eq.s32.totalorder %s33, 1
      %p166 = por %p164, %p165
      %p167 = scmp.ne.s32.totalorder %s158, %s159
      %p168 = scmp.eq.s32.totalorder %s33, 0
      %p169 = por %p167, %p168
      %p170 = scmp.ne.s32.totalorder %s158, %s159
      %p171 = scmp.eq.s32.totalorder %s34, 1
      %p172 = por %p170, %p171
      %p174 = scmp.ne.s32.totalorder %s159, %s173
      %p175 = scmp.eq.s32.totalorder %s34, 0
      %p176 = por %p174, %p175
      %s178 = sadd.s32 %s177, 1
      %p181 = scmp.eq.s32.totalorder %s28, 1
      %p182 = scmp.ne.s32.totalorder %s177, %s179
      %p183 = scmp.eq.s32.totalorder %s28, 0
      %p184 = por %p182, %p183
      %p185 = scmp.ne.s32.totalorder %s177, %s179
      %p186 = scmp.eq.s32.totalorder %s33, 1
      %p187 = por %p185, %p186
      %p188 = scmp.ne.s32.totalorder %s179, %s180
      %p189 = scmp.eq.s32.totalorder %s33, 0
      %p190 = por %p188, %p189
      %p191 = scmp.ne.s32.totalorder %s179, %s180
      %p192 = scmp.eq.s32.totalorder %s34, 1
      %p193 = por %p191, %p192
      %p195 = scmp.ne.s32.totalorder %s180, %s194
      %p196 = scmp.eq.s32.totalorder %s34, 0
      %p197 = por %p195, %p196
      %s198 = ssub.s32 %s28, %s35
      %p199 = scmp.eq.s32.totalorder %s198, 0
      %s201 = sadd.s32 %s200, 1
      %s202 = scalar_select %p199, %s200, %s201
      %p205 = pneg %p199
      %p206 = scmp.eq.s32.totalorder %s28, 1
      %p207 = por %p205, %p206
      %p208 = scmp.ne.s32.totalorder %s200, %s203
      %p209 = scmp.eq.s32.totalorder %s28, 0
      %p210 = por %p208, %p209
      %p211 = scmp.ne.s32.totalorder %s200, %s203
      %p212 = scmp.eq.s32.totalorder %s33, 1
      %p213 = por %p211, %p212
      %p214 = scmp.ne.s32.totalorder %s203, %s204
      %p215 = scmp.eq.s32.totalorder %s33, 0
      %p216 = por %p214, %p215
      %p217 = scmp.ne.s32.totalorder %s203, %s204
      %p218 = scmp.eq.s32.totalorder %s34, 1
      %p219 = por %p217, %p218
      %p221 = scmp.ne.s32.totalorder %s204, %s220
      %p222 = scmp.eq.s32.totalorder %s34, 0
      %p223 = por %p221, %p222
      %s224 = ssub.s32 %s28, %s35
      %p225 = scmp.eq.s32.totalorder %s224, 0
      %s227 = sadd.s32 %s226, 1
      %s228 = scalar_select %p225, %s226, %s227
      %p231 = pneg %p225
      %p232 = scmp.eq.s32.totalorder %s28, 1
      %p233 = por %p231, %p232
      %p234 = scmp.ne.s32.totalorder %s226, %s229
      %p235 = scmp.eq.s32.totalorder %s28, 0
      %p236 = por %p234, %p235
      %p237 = scmp.ne.s32.totalorder %s226, %s229
      %p238 = scmp.eq.s32.totalorder %s33, 1
      %p239 = por %p237, %p238
      %p240 = scmp.ne.s32.totalorder %s229, %s230
      %p241 = scmp.eq.s32.totalorder %s33, 0
      %p242 = por %p240, %p241
      %p243 = scmp.ne.s32.totalorder %s229, %s230
      %p244 = scmp.eq.s32.totalorder %s34, 1
      %p245 = por %p243, %p244
      %p247 = scmp.ne.s32.totalorder %s230, %s246
      %p248 = scmp.eq.s32.totalorder %s34, 0
      %p249 = por %p247, %p248
      %p250 = scmp.le.s32.totalorder 1, %s28
      %p251 = scmp.lt.s32.totalorder %s28, 3
      %p252 = pnand %p250, %p251
      %p253 = pneg %p252
      // Predicated region
      $region9: #{tpu_custom_call.1} parent=5 // pred_check
        _
      $region10: #{tpu_custom_call.1} parent=5 // pred_check_branch
        %255 = sbr.rel (%p252) target = $region12
      $region11: #{tpu_custom_call.1} parent=5 // pred_region
        %s256 = ssub.s32 %s28, 1
        // Predicated region
        $region13: #{tpu_custom_call.1} parent=11 // pred_check
          %p257 = pneg %p127
        $region14: #{tpu_custom_call.1} parent=11 // pred_check_branch
          %259 = sbr.rel (%p257) target = $region16
        $region15: #{tpu_custom_call.1} parent=11 // pred_region
          %s261 = ssub.s32 512, 512
          %262 = vsyncadd [#allocation10], %s261
          %s263 = sshll.u32 [#allocation9], 4
          %s264 = int_to_ptr.vmem [resolvable:$true] %s263
          %269 = dma.hbm_to_vmem [thread:$0]  %s3, 512, %s264, [#allocation10], 128, 128, 8
        $region16: #{tpu_custom_call.1} parent=11 // pred_fallthru
          _
        // Predicated region
        $region17: #{tpu_custom_call.1} parent=11 // pred_check
          %p270 = pneg %p148
        $region18: #{tpu_custom_call.1} parent=11 // pred_check_branch
          %272 = sbr.rel (%p270) target = $region20
        $region19: #{tpu_custom_call.1} parent=11 // pred_region
          _
        $region20: #{tpu_custom_call.1} parent=11 // pred_fallthru
          _
        // Predicated region
        $region21: #{tpu_custom_call.1} parent=11 // pred_check
          %p273 = pneg %p169
        $region22: #{tpu_custom_call.1} parent=11 // pred_check_branch
          %275 = sbr.rel (%p273) target = $region24
        $region23: #{tpu_custom_call.1} parent=11 // pred_region
          %s277 = ssub.s32 512, 512
          %278 = vsyncadd [#allocation10], %s277
          %s279 = sshll.u32 [#allocation11], 4
          %s280 = int_to_ptr.vmem [resolvable:$true] %s279
          %285 = dma.hbm_to_vmem [thread:$0]  %s5, 512, %s280, [#allocation10], 128, 128, 8
        $region24: #{tpu_custom_call.1} parent=11 // pred_fallthru
          _
        // Predicated region
        $region25: #{tpu_custom_call.1} parent=11 // pred_check
          %p286 = pneg %p190
        $region26: #{tpu_custom_call.1} parent=11 // pred_check_branch
          %288 = sbr.rel (%p286) target = $region28
        $region27: #{tpu_custom_call.1} parent=11 // pred_region
          _
        $region28: #{tpu_custom_call.1} parent=11 // pred_fallthru
          _
      $region12: #{tpu_custom_call.1} parent=5 // pred_fallthru
        _
      %p289 = scmp.lt.s32.totalorder %s28, 2
      // Predicated region
      $region29: #{tpu_custom_call.1} parent=5 // pred_check
        %p290 = pneg %p289
      $region30: #{tpu_custom_call.1} parent=5 // pred_check_branch
        %292 = sbr.rel (%p290) target = $region32
      $region31: #{tpu_custom_call.1} parent=5 // pred_region
        // Predicated region
        $region33: #{tpu_custom_call.1} parent=31 // pred_check
          %p293 = pneg %p48
        $region34: #{tpu_custom_call.1} parent=31 // pred_check_branch
          %295 = sbr.rel (%p293) target = $region36
        $region35: #{tpu_custom_call.1} parent=31 // pred_region
          %s296 = sand.u32 %s38, 1
          %s297 = scalar_lea.sflag [#allocation4], %s296
          %s298 = sand.u32 %s38, 1
          %s299 = smul.addr %s298, 8
          %s300 = scalar_lea.vmem [#allocation3], %s299
          %s302 = ssub.s32 128, 128
          %303 = vsyncadd %s297, %s302
          %s304 = smul.addr %s28, 128
          %s305 = scalar_lea.hbm %s0, %s304
          %s307 = sshll.u32 %s300, 4
          %s308 = int_to_ptr.vmem [resolvable:$true] %s307
          %310 = dma.hbm_to_vmem [thread:$0]  %s305, 128, %s308, %s297
        $region36: #{tpu_custom_call.1} parent=31 // pred_fallthru
          _
        // Predicated region
        $region37: #{tpu_custom_call.1} parent=31 // pred_check
          %p311 = pneg %p74
        $region38: #{tpu_custom_call.1} parent=31 // pred_check_branch
          %313 = sbr.rel (%p311) target = $region40
        $region39: #{tpu_custom_call.1} parent=31 // pred_region
          %s314 = sand.u32 %s28, 1
          %s315 = scalar_lea.sflag [#allocation7], %s314
          %s316 = sand.u32 %s64, 1
          %s317 = smul.addr %s316, 8
          %s318 = scalar_lea.vmem [#allocation6], %s317
          %s320 = ssub.s32 128, 128
          %321 = vsyncadd %s315, %s320
          %s322 = smul.addr %s28, 128
          %s323 = scalar_lea.hbm %s1, %s322
          %s325 = sshll.u32 %s318, 4
          %s326 = int_to_ptr.vmem [resolvable:$true] %s325
          %328 = dma.hbm_to_vmem [thread:$0]  %s323, 128, %s326, %s315
        $region40: #{tpu_custom_call.1} parent=31 // pred_fallthru
          _
        // Predicated region
        $region41: #{tpu_custom_call.1} parent=31 // pred_check
          %p329 = pneg %p100
        $region42: #{tpu_custom_call.1} parent=31 // pred_check_branch
          %331 = sbr.rel (%p329) target = $region44
        $region43: #{tpu_custom_call.1} parent=31 // pred_region
          %s332 = sand.u32 %s28, 1
          %s333 = scalar_lea.sflag [#allocation7], %s332
          %s334 = sand.u32 %s90, 1
          %s335 = smul.addr %s334, 8
          %s336 = scalar_lea.vmem [#allocation8], %s335
          %s338 = ssub.s32 128, 128
          %339 = vsyncadd %s333, %s338
          %s340 = smul.addr %s28, 128
          %s341 = scalar_lea.hbm %s2, %s340
          %s343 = sshll.u32 %s336, 4
          %s344 = int_to_ptr.vmem [resolvable:$true] %s343
          %346 = dma.hbm_to_vmem [thread:$0]  %s341, 128, %s344, %s333
        $region44: #{tpu_custom_call.1} parent=31 // pred_fallthru
          _
      $region32: #{tpu_custom_call.1} parent=5 // pred_fallthru
        _
      %p347 = scmp.le.s32.totalorder 1, %s28
      %p348 = scmp.lt.s32.totalorder %s28, 3
      %p349 = pnand %p347, %p348
      %p350 = pneg %p349
      // Predicated region
      $region45: #{tpu_custom_call.1} parent=5 // pred_check
        _
      $region46: #{tpu_custom_call.1} parent=5 // pred_check_branch
        %352 = sbr.rel (%p349) target = $region48
      $region47: #{tpu_custom_call.1} parent=5 // pred_region
        %s353 = ssub.s32 %s28, 1
        %s354 = sand.u32 %s41, 1
        %s355 = scalar_lea.sflag [#allocation4], %s354
        %s356 = sand.u32 %s41, 1
        %s357 = smul.addr %s356, 8
        %s358 = scalar_lea.vmem [#allocation3], %s357
        // Predicated region
        $region49: #{tpu_custom_call.1} parent=47 // pred_check
          %p359 = pneg %p54
        $region50: #{tpu_custom_call.1} parent=47 // pred_check_branch
          %361 = sbr.rel (%p359) target = $region52
        $region51: #{tpu_custom_call.1} parent=47 // pred_region
          %362 = dma.done %s355, 128
        $region52: #{tpu_custom_call.1} parent=47 // pred_fallthru
          _
        %s363 = sand.u32 %s33, 1
        %s364 = scalar_lea.sflag [#allocation7], %s363
        %s365 = sand.u32 %s67, 1
        %s366 = smul.addr %s365, 8
        %s367 = scalar_lea.vmem [#allocation6], %s366
        // Predicated region
        $region53: #{tpu_custom_call.1} parent=47 // pred_check
          %p368 = pneg %p80
        $region54: #{tpu_custom_call.1} parent=47 // pred_check_branch
          %370 = sbr.rel (%p368) target = $region56
        $region55: #{tpu_custom_call.1} parent=47 // pred_region
          %371 = dma.done %s364, 128
        $region56: #{tpu_custom_call.1} parent=47 // pred_fallthru
          _
        %s372 = sand.u32 %s33, 1
        %s373 = scalar_lea.sflag [#allocation7], %s372
        %s374 = sand.u32 %s93, 1
        %s375 = smul.addr %s374, 8
        %s376 = scalar_lea.vmem [#allocation8], %s375
        // Predicated region
        $region57: #{tpu_custom_call.1} parent=47 // pred_check
          %p377 = pneg %p106
        $region58: #{tpu_custom_call.1} parent=47 // pred_check_branch
          %379 = sbr.rel (%p377) target = $region60
        $region59: #{tpu_custom_call.1} parent=47 // pred_region
          %380 = dma.done %s373, 128
        $region60: #{tpu_custom_call.1} parent=47 // pred_fallthru
          _
        // Predicated region
        $region61: #{tpu_custom_call.1} parent=47 // pred_check
          %p381 = pneg %p127
        $region62: #{tpu_custom_call.1} parent=47 // pred_check_branch
          %383 = sbr.rel (%p381) target = $region64
        $region63: #{tpu_custom_call.1} parent=47 // pred_region
          %384 = dma.done [#allocation10], 512
        $region64: #{tpu_custom_call.1} parent=47 // pred_fallthru
          _
        // Predicated region
        $region65: #{tpu_custom_call.1} parent=47 // pred_check
          %p385 = pneg %p169
        $region66: #{tpu_custom_call.1} parent=47 // pred_check_branch
          %387 = sbr.rel (%p385) target = $region68
        $region67: #{tpu_custom_call.1} parent=47 // pred_region
          %388 = dma.done [#allocation10], 512
        $region68: #{tpu_custom_call.1} parent=47 // pred_fallthru
          _
        %s389 = sand.u32 %s41, 1
        %s390 = scalar_lea.sflag [#allocation4], %s389
        %s391 = sand.u32 %s41, 1
        %s392 = smul.addr %s391, 8
        %s393 = scalar_lea.vmem [#allocation3], %s392
        %p394 = pneg %p54
        %p395 = pneg %p51
        %s396 = sand.u32 %s33, 1
        %s397 = scalar_lea.sflag [#allocation7], %s396
        %s398 = sand.u32 %s67, 1
        %s399 = smul.addr %s398, 8
        %s400 = scalar_lea.vmem [#allocation6], %s399
        %p401 = pneg %p80
        %p402 = pneg %p77
        %s403 = sand.u32 %s33, 1
        %s404 = scalar_lea.sflag [#allocation7], %s403
        %s405 = sand.u32 %s93, 1
        %s406 = smul.addr %s405, 8
        %s407 = scalar_lea.vmem [#allocation8], %s406
        %p408 = pneg %p106
        %p409 = pneg %p103
        %p410 = pneg %p127
        %p411 = pneg %p124
        %p412 = pneg %p148
        %p413 = pneg %p145
        %p414 = pneg %p169
        %p415 = pneg %p166
        %p416 = pneg %p190
        %p417 = pneg %p187
        %p418 = pneg %p216
        %p419 = pneg %p213
        %s420 = sand.u32 %s203, 1
        %s421 = scalar_lea.sflag [#allocation5], %s420
        %s422 = sand.u32 %s203, 1
        %s423 = smul.addr %s422, 8
        %s424 = scalar_lea.vmem [#allocation12], %s423
        %p425 = pneg %p242
        %p426 = pneg %p239
        %s427 = sand.u32 %s229, 1
        %s428 = scalar_lea.sflag [#allocation14], %s427
        %s429 = sand.u32 %s229, 1
        %s430 = smul.addr %s429, 32
        %s431 = scalar_lea.vmem [#allocation13], %s430
        %v432 = vld [vmem:[%s358] sm:$0xff]
        %v433 = vld [vmem:[%s367] sm:$0xff]
        %v434 = vld [vmem:[%s376] sm:$0xff]
        %v435 = vld [vmem:[#allocation9] sm:$0xff]
        %v436 = vld [vmem:[#allocation9 + $0x8] sm:$0xff]
        %v437 = vld [vmem:[#allocation9 + $0x10] sm:$0xff]
        %v438 = vld [vmem:[#allocation9 + $0x18] sm:$0xff]
        %v439 = vld [vmem:[%s4] sm:$0x1]
        %v441 = vlaneseq
        %v442 = vshrl.u32 %v441, 7
        %v443 = vsub.s32 0, %v442
        %v444 = vrot.slane %v439, %v443
        %vm446 = vcmask 261120
        %v448 = vsel %vm446, %v432, 0
        %v451 = vsel %vm446, %v433, 0
        %v454 = vsel %vm446, %v434, 0
        %456 = vmatprep.subr.mxu0 0.0
        %457 = vmatpush1.msra.mxu0 %v435
        %458 = vmatprep.subr.mxu0 0.0
        %459 = vmatpush1.msra.mxu0 %v436
        %460 = vmatprep.subr.mxu0 0.0
        %461 = vmatpush1.msra.mxu0 %v437
        %462 = vmatprep.subr.mxu0 0.0
        %463 = vmatpush1.msra.mxu0 %v438
        %464 = vmatprep.subr.mxu0 0.0
        %465 = vmatpush1.msra.mxu0 0.0
        %466 = vmatprep.subr.mxu0 0.0
        %467 = vmatpush1.msra.mxu0 0.0
        %468 = vmatprep.subr.mxu0 0.0
        %469 = vmatpush1.msra.mxu0 0.0
        %470 = vmatprep.subr.mxu0 0.0
        %471 = vmatpush1.msra.mxu0 0.0
        %472 = vmatprep.subr.mxu0 0.0
        %473 = vmatpush1.msra.mxu0 0.0
        %474 = vmatprep.subr.mxu0 0.0
        %475 = vmatpush1.msra.mxu0 0.0
        %476 = vmatprep.subr.mxu0 0.0
        %477 = vmatpush1.msra.mxu0 0.0
        %478 = vmatprep.subr.mxu0 0.0
        %479 = vmatpush1.msra.mxu0 0.0
        %480 = vmatprep.subr.mxu0 0.0
        %481 = vmatpush1.msra.mxu0 0.0
        %482 = vmatprep.subr.mxu0 0.0
        %483 = vmatpush1.msra.mxu0 0.0
        %484 = vmatprep.subr.mxu0 0.0
        %485 = vmatpush1.msra.mxu0 0.0
        %486 = vmatprep.subr.mxu0 0.0
        %487 = vmatpush1.msra.mxu0 0.0
        %488 = vmatprep.subr.mxu0 0.0
        %489 = vmatpush1.msra.mxu0 0.0
        %490 = vmatprep.subr.mxu0 0.0
        %491 = vmatpush1.msra.mxu0 0.0
        %492 = vmatprep.subr.mxu0 0.0
        %493 = vmatpush1.msra.mxu0 0.0
        %494 = vmatprep.subr.mxu0 0.0
        %495 = vmatpush1.msra.mxu0 0.0
        %496 = vmatprep.subr.mxu0 0.0
        %497 = vmatpush1.msra.mxu0 0.0
        %498 = vmatprep.subr.mxu0 0.0
        %499 = vmatpush1.msra.mxu0 0.0
        %500 = vmatprep.subr.mxu0 0.0
        %501 = vmatpush1.msra.mxu0 0.0
        %502 = vmatprep.subr.mxu0 0.0
        %503 = vmatpush1.msra.mxu0 0.0
        %504 = vmatprep.subr.mxu0 0.0
        %505 = vmatpush1.msra.mxu0 0.0
        %506 = vmatprep.subr.mxu0 0.0
        %507 = vmatpush1.msra.mxu0 0.0
        %508 = vmatprep.subr.mxu0 0.0
        %509 = vmatpush1.msra.mxu0 0.0
        %510 = vmatprep.subr.mxu0 0.0
        %511 = vmatpush1.msra.mxu0 0.0
        %512 = vmatprep.subr.mxu0 0.0
        %513 = vmatpush1.msra.mxu0 0.0
        %514 = vmatprep.subr.mxu0 0.0
        %515 = vmatpush1.msra.mxu0 0.0
        %516 = vmatprep.subr.mxu0 0.0
        %517 = vmatpush1.msra.mxu0 0.0
        %518 = vmatprep.subr.mxu0 0.0
        %519 = vmatpush1.msra.mxu0 0.0
        %520 = vmatprep.mubr.f32.mxu0 0.0
        %521 = vmatmul.mubr.f32.gmra.mrb[0].mxu0 %v448
        %v522 = vpop.f32.mrb[0].mxu0
        %v523 = vadd.f32 %v444, %v522
        %v524 = vpop.f32.mrb[0].mxu0
        %525 = vmatprep.mubr.f32.mxu0 0.0
        %526 = vmatmul.mubr.f32.gmra.mrb[0].mxu0 %v451
        %v527 = vpop.f32.mrb[0].mxu0
        %v528 = vadd.f32 %v444, %v527
        %v529 = vpop.f32.mrb[0].mxu0
        %530 = vmatprep.mubr.f32.mxu0 0.0
        %531 = vmatmul.mubr.f32.gmra.mrb[0].mxu0 %v454
        %v532 = vpop.f32.mrb[0].mxu0
        %v533 = vadd.f32 %v444, %v532
        %v534 = vpop.f32.mrb[0].mxu0
        %535 = vdwg.mxu0
        %537 = vrot.lane.b32.xlu0 %v523, 112
        %v538 = vpop.permute.xlu0 %537
        %540 = vrot.lane.b32.xlu0 %v528, 96
        %v541 = vpop.permute.xlu0 %540
        %vm542 = vcmask 64512
        %v543 = vsel %vm542, %v523, 0
        %v545 = vsel %vm542, %v538, 0
        %v547 = vsel %vm542, %v541, 0
        %549 = vmatprep.subr.mxu0 0.0
        %550 = vmatpush1.xpose.msra.mxu0 %v547
        %551 = vmatprep.subr.mxu0 0.0
        %552 = vmatpush1.xpose.msra.mxu0 0.0
        %553 = vmatprep.subr.mxu0 0.0
        %554 = vmatpush1.xpose.msra.mxu0 0.0
        %555 = vmatprep.subr.mxu0 0.0
        %556 = vmatpush1.xpose.msra.mxu0 0.0
        %557 = vmatprep.subr.mxu0 0.0
        %558 = vmatpush1.xpose.msra.mxu0 0.0
        %559 = vmatprep.subr.mxu0 0.0
        %560 = vmatpush1.xpose.msra.mxu0 0.0
        %561 = vmatprep.subr.mxu0 0.0
        %562 = vmatpush1.xpose.msra.mxu0 0.0
        %563 = vmatprep.subr.mxu0 0.0
        %564 = vmatpush1.xpose.msra.mxu0 0.0
        %565 = vmatprep.subr.mxu0 0.0
        %566 = vmatpush1.xpose.msra.mxu0 0.0
        %567 = vmatprep.subr.mxu0 0.0
        %568 = vmatpush1.xpose.msra.mxu0 0.0
        %569 = vmatprep.subr.mxu0 0.0
        %570 = vmatpush1.xpose.msra.mxu0 0.0
        %571 = vmatprep.subr.mxu0 0.0
        %572 = vmatpush1.xpose.msra.mxu0 0.0
        %573 = vmatprep.subr.mxu0 0.0
        %574 = vmatpush1.xpose.msra.mxu0 0.0
        %575 = vmatprep.subr.mxu0 0.0
        %576 = vmatpush1.xpose.msra.mxu0 0.0
        %577 = vmatprep.subr.mxu0 0.0
        %578 = vmatpush1.xpose.msra.mxu0 0.0
        %579 = vmatprep.subr.mxu0 0.0
        %580 = vmatpush1.xpose.msra.mxu0 0.0
        %581 = vmatprep.subr.mxu0 0.0
        %582 = vmatpush1.xpose.msra.mxu0 0.0
        %583 = vmatprep.subr.mxu0 0.0
        %584 = vmatpush1.xpose.msra.mxu0 0.0
        %585 = vmatprep.subr.mxu0 0.0
        %586 = vmatpush1.xpose.msra.mxu0 0.0
        %587 = vmatprep.subr.mxu0 0.0
        %588 = vmatpush1.xpose.msra.mxu0 0.0
        %589 = vmatprep.subr.mxu0 0.0
        %590 = vmatpush1.xpose.msra.mxu0 0.0
        %591 = vmatprep.subr.mxu0 0.0
        %592 = vmatpush1.xpose.msra.mxu0 0.0
        %593 = vmatprep.subr.mxu0 0.0
        %594 = vmatpush1.xpose.msra.mxu0 0.0
        %595 = vmatprep.subr.mxu0 0.0
        %596 = vmatpush1.xpose.msra.mxu0 0.0
        %597 = vmatprep.subr.mxu0 0.0
        %598 = vmatpush1.xpose.msra.mxu0 0.0
        %599 = vmatprep.subr.mxu0 0.0
        %600 = vmatpush1.xpose.msra.mxu0 0.0
        %601 = vmatprep.subr.mxu0 0.0
        %602 = vmatpush1.xpose.msra.mxu0 0.0
        %603 = vmatprep.subr.mxu0 0.0
        %604 = vmatpush1.xpose.msra.mxu0 0.0
        %605 = vmatprep.subr.mxu0 0.0
        %606 = vmatpush1.xpose.msra.mxu0 0.0
        %607 = vmatprep.subr.mxu0 0.0
        %608 = vmatpush1.xpose.msra.mxu0 0.0
        %609 = vmatprep.subr.mxu0 0.0
        %610 = vmatpush1.xpose.msra.mxu0 0.0
        %611 = vmatprep.subr.mxu0 0.0
        %612 = vmatpush1.xpose.msra.mxu0 0.0
        %613 = vmatprep.mubr.f32.mxu0 0.0
        %614 = vmatmul.mubr.f32.gmra.mrb[0].mxu0 %v543
        %v615 = vpop.f32.mrb[0].mxu0
        %v616 = vadd.f32 0.0, %v615
        %v617 = vpop.f32.mrb[0].mxu0
        %618 = vmatprep.mubr.f32.mxu0 0.0
        %619 = vmatmul.mubr.f32.gmra.mrb[0].mxu0 %v545
        %v620 = vpop.f32.mrb[0].mxu0
        %v621 = vadd.f32 0.0, %v620
        %v622 = vpop.f32.mrb[0].mxu0
        %623 = vdwg.mxu0
        %v624 = vsel %vm542, %v616, -inf
        %625 = vmax.xlane.f32.xlu0 %v624
        %v626 = vpop.xlane.xlu0 %625
        %v627 = vsel %vm542, %v621, -inf
        %628 = vmax.xlane.f32.xlu0 %v627
        %v629 = vpop.xlane.xlu0 %628
        %v630 = vsub.f32 %v616, %v626
        %v631 = vsub.f32 %v621, %v629
        %v632 = vmul.f32 %v630, 1.442695
        %v633 = vpow.pop %v632
        %v634 = vmul.f32 %v631, 1.442695
        %v635 = vpow.pop %v634
        %v636 = vsel %vm542, %v633, 0.0
        %637 = vadd.xlane.f32.xlu0 %v636
        %v638 = vpop.xlane.xlu0 %637
        %v639 = vsel %vm542, %v635, 0.0
        %640 = vadd.xlane.f32.xlu0 %v639
        %v641 = vpop.xlane.xlu0 %640
        %v642 = vrcp.pop %v638
        %v643 = vrcp.pop %v641
        %v644 = vmul.f32 %v633, %v642
        %v645 = vmul.f32 %v635, %v643
        %647 = vrot.lane.b32.xlu0 %v533, 80
        %v648 = vpop.permute.xlu0 %647
        %v651 = vsel %vm542, %v644, 0
        %v654 = vsel %vm542, %v645, 0
        %656 = vmatprep.subr.mxu0 0.0
        %657 = vmatpush1.msra.mxu0 %v648
        %658 = vmatprep.subr.mxu0 0.0
        %659 = vmatpush1.msra.mxu0 0.0
        %660 = vmatprep.subr.mxu0 0.0
        %661 = vmatpush1.msra.mxu0 0.0
        %662 = vmatprep.subr.mxu0 0.0
        %663 = vmatpush1.msra.mxu0 0.0
        %664 = vmatprep.subr.mxu0 0.0
        %665 = vmatpush1.msra.mxu0 0.0
        %666 = vmatprep.subr.mxu0 0.0
        %667 = vmatpush1.msra.mxu0 0.0
        %668 = vmatprep.subr.mxu0 0.0
        %669 = vmatpush1.msra.mxu0 0.0
        %670 = vmatprep.subr.mxu0 0.0
        %671 = vmatpush1.msra.mxu0 0.0
        %672 = vmatprep.subr.mxu0 0.0
        %673 = vmatpush1.msra.mxu0 0.0
        %674 = vmatprep.subr.mxu0 0.0
        %675 = vmatpush1.msra.mxu0 0.0
        %676 = vmatprep.subr.mxu0 0.0
        %677 = vmatpush1.msra.mxu0 0.0
        %678 = vmatprep.subr.mxu0 0.0
        %679 = vmatpush1.msra.mxu0 0.0
        %680 = vmatprep.subr.mxu0 0.0
        %681 = vmatpush1.msra.mxu0 0.0
        %682 = vmatprep.subr.mxu0 0.0
        %683 = vmatpush1.msra.mxu0 0.0
        %684 = vmatprep.subr.mxu0 0.0
        %685 = vmatpush1.msra.mxu0 0.0
        %686 = vmatprep.subr.mxu0 0.0
        %687 = vmatpush1.msra.mxu0 0.0
        %688 = vmatprep.subr.mxu0 0.0
        %689 = vmatpush1.msra.mxu0 0.0
        %690 = vmatprep.subr.mxu0 0.0
        %691 = vmatpush1.msra.mxu0 0.0
        %692 = vmatprep.subr.mxu0 0.0
        %693 = vmatpush1.msra.mxu0 0.0
        %694 = vmatprep.subr.mxu0 0.0
        %695 = vmatpush1.msra.mxu0 0.0
        %696 = vmatprep.subr.mxu0 0.0
        %697 = vmatpush1.msra.mxu0 0.0
        %698 = vmatprep.subr.mxu0 0.0
        %699 = vmatpush1.msra.mxu0 0.0
        %700 = vmatprep.subr.mxu0 0.0
        %701 = vmatpush1.msra.mxu0 0.0
        %702 = vmatprep.subr.mxu0 0.0
        %703 = vmatpush1.msra.mxu0 0.0
        %704 = vmatprep.subr.mxu0 0.0
        %705 = vmatpush1.msra.mxu0 0.0
        %706 = vmatprep.subr.mxu0 0.0
        %707 = vmatpush1.msra.mxu0 0.0
        %708 = vmatprep.subr.mxu0 0.0
        %709 = vmatpush1.msra.mxu0 0.0
        %710 = vmatprep.subr.mxu0 0.0
        %711 = vmatpush1.msra.mxu0 0.0
        %712 = vmatprep.subr.mxu0 0.0
        %713 = vmatpush1.msra.mxu0 0.0
        %714 = vmatprep.subr.mxu0 0.0
        %715 = vmatpush1.msra.mxu0 0.0
        %716 = vmatprep.subr.mxu0 0.0
        %717 = vmatpush1.msra.mxu0 0.0
        %718 = vmatprep.subr.mxu0 0.0
        %719 = vmatpush1.msra.mxu0 0.0
        %720 = vmatprep.mubr.f32.mxu0 0.0
        %721 = vmatmul.mubr.f32.gmra.mrb[0].mxu0 %v651
        %v722 = vpop.f32.mrb[0].mxu0
        %v723 = vadd.f32 0.0, %v722
        %v724 = vpop.f32.mrb[0].mxu0
        %725 = vmatprep.mubr.f32.mxu0 0.0
        %726 = vmatmul.mubr.f32.gmra.mrb[0].mxu0 %v654
        %v727 = vpop.f32.mrb[0].mxu0
        %v728 = vadd.f32 0.0, %v727
        %v729 = vpop.f32.mrb[0].mxu0
        %730 = vdwg.mxu0
        %731 = vst.msk [vmem:[%s431] sm:$0xff] %vm542, %v644
        %732 = vst.msk [vmem:[#allocation2] sm:$0xff] %vm542, %v723
        %s733 = scalar_lea.vmem %s431, 16 [#allocation13]
        %734 = vst.msk [vmem:[%s733] sm:$0xff] %vm542, %v645
        %736 = vrot.lane.b32.xlu0 %v728, 16
        %v737 = vpop.permute.xlu0 %736
        %vm739 = vcmask 195712
        %740 = vst.msk [vmem:[#allocation2] sm:$0xff] %vm739, %v737
        %741 = vrot.lane.b32.xlu0 %v523, 120
        %v742 = vpop.permute.xlu0 %741
        %743 = vrot.lane.b32.xlu0 %v538, 120
        %v744 = vpop.permute.xlu0 %743
        %745 = vrot.lane.b32.xlu0 %v528, 88
        %v746 = vpop.permute.xlu0 %745
        %v747 = vsel %vm542, %v742, 0
        %v749 = vsel %vm542, %v744, 0
        %v751 = vsel %vm542, %v746, 0
        %753 = vmatprep.subr.mxu0 0.0
        %754 = vmatpush1.xpose.msra.mxu0 %v751
        %755 = vmatprep.subr.mxu0 0.0
        %756 = vmatpush1.xpose.msra.mxu0 0.0
        %757 = vmatprep.subr.mxu0 0.0
        %758 = vmatpush1.xpose.msra.mxu0 0.0
        %759 = vmatprep.subr.mxu0 0.0
        %760 = vmatpush1.xpose.msra.mxu0 0.0
        %761 = vmatprep.subr.mxu0 0.0
        %762 = vmatpush1.xpose.msra.mxu0 0.0
        %763 = vmatprep.subr.mxu0 0.0
        %764 = vmatpush1.xpose.msra.mxu0 0.0
        %765 = vmatprep.subr.mxu0 0.0
        %766 = vmatpush1.xpose.msra.mxu0 0.0
        %767 = vmatprep.subr.mxu0 0.0
        %768 = vmatpush1.xpose.msra.mxu0 0.0
        %769 = vmatprep.subr.mxu0 0.0
        %770 = vmatpush1.xpose.msra.mxu0 0.0
        %771 = vmatprep.subr.mxu0 0.0
        %772 = vmatpush1.xpose.msra.mxu0 0.0
        %773 = vmatprep.subr.mxu0 0.0
        %774 = vmatpush1.xpose.msra.mxu0 0.0
        %775 = vmatprep.subr.mxu0 0.0
        %776 = vmatpush1.xpose.msra.mxu0 0.0
        %777 = vmatprep.subr.mxu0 0.0
        %778 = vmatpush1.xpose.msra.mxu0 0.0
        %779 = vmatprep.subr.mxu0 0.0
        %780 = vmatpush1.xpose.msra.mxu0 0.0
        %781 = vmatprep.subr.mxu0 0.0
        %782 = vmatpush1.xpose.msra.mxu0 0.0
        %783 = vmatprep.subr.mxu0 0.0
        %784 = vmatpush1.xpose.msra.mxu0 0.0
        %785 = vmatprep.subr.mxu0 0.0
        %786 = vmatpush1.xpose.msra.mxu0 0.0
        %787 = vmatprep.subr.mxu0 0.0
        %788 = vmatpush1.xpose.msra.mxu0 0.0
        %789 = vmatprep.subr.mxu0 0.0
        %790 = vmatpush1.xpose.msra.mxu0 0.0
        %791 = vmatprep.subr.mxu0 0.0
        %792 = vmatpush1.xpose.msra.mxu0 0.0
        %793 = vmatprep.subr.mxu0 0.0
        %794 = vmatpush1.xpose.msra.mxu0 0.0
        %795 = vmatprep.subr.mxu0 0.0
        %796 = vmatpush1.xpose.msra.mxu0 0.0
        %797 = vmatprep.subr.mxu0 0.0
        %798 = vmatpush1.xpose.msra.mxu0 0.0
        %799 = vmatprep.subr.mxu0 0.0
        %800 = vmatpush1.xpose.msra.mxu0 0.0
        %801 = vmatprep.subr.mxu0 0.0
        %802 = vmatpush1.xpose.msra.mxu0 0.0
        %803 = vmatprep.subr.mxu0 0.0
        %804 = vmatpush1.xpose.msra.mxu0 0.0
        %805 = vmatprep.subr.mxu0 0.0
        %806 = vmatpush1.xpose.msra.mxu0 0.0
        %807 = vmatprep.subr.mxu0 0.0
        %808 = vmatpush1.xpose.msra.mxu0 0.0
        %809 = vmatprep.subr.mxu0 0.0
        %810 = vmatpush1.xpose.msra.mxu0 0.0
        %811 = vmatprep.subr.mxu0 0.0
        %812 = vmatpush1.xpose.msra.mxu0 0.0
        %813 = vmatprep.subr.mxu0 0.0
        %814 = vmatpush1.xpose.msra.mxu0 0.0
        %815 = vmatprep.subr.mxu0 0.0
        %816 = vmatpush1.xpose.msra.mxu0 0.0
        %817 = vmatprep.mubr.f32.mxu0 0.0
        %818 = vmatmul.mubr.f32.gmra.mrb[0].mxu0 %v747
        %v819 = vpop.f32.mrb[0].mxu0
        %v820 = vadd.f32 0.0, %v819
        %v821 = vpop.f32.mrb[0].mxu0
        %822 = vmatprep.mubr.f32.mxu0 0.0
        %823 = vmatmul.mubr.f32.gmra.mrb[0].mxu0 %v749
        %v824 = vpop.f32.mrb[0].mxu0
        %v825 = vadd.f32 0.0, %v824
        %v826 = vpop.f32.mrb[0].mxu0
        %827 = vdwg.mxu0
        %v828 = vsel %vm542, %v820, -inf
        %829 = vmax.xlane.f32.xlu0 %v828
        %v830 = vpop.xlane.xlu0 %829
        %v831 = vsel %vm542, %v825, -inf
        %832 = vmax.xlane.f32.xlu0 %v831
        %v833 = vpop.xlane.xlu0 %832
        %v834 = vsub.f32 %v820, %v830
        %v835 = vsub.f32 %v825, %v833
        %v836 = vmul.f32 %v834, 1.442695
        %v837 = vpow.pop %v836
        %v838 = vmul.f32 %v835, 1.442695
        %v839 = vpow.pop %v838
        %v840 = vsel %vm542, %v837, 0.0
        %841 = vadd.xlane.f32.xlu0 %v840
        %v842 = vpop.xlane.xlu0 %841
        %v843 = vsel %vm542, %v839, 0.0
        %844 = vadd.xlane.f32.xlu0 %v843
        %v845 = vpop.xlane.xlu0 %844
        %v846 = vrcp.pop %v842
        %v847 = vrcp.pop %v845
        %v848 = vmul.f32 %v837, %v846
        %v849 = vmul.f32 %v839, %v847
        %850 = vrot.lane.b32.xlu0 %v533, 72
        %v851 = vpop.permute.xlu0 %850
        %v854 = vsel %vm542, %v848, 0
        %v857 = vsel %vm542, %v849, 0
        %859 = vmatprep.subr.mxu0 0.0
        %860 = vmatpush1.msra.mxu0 %v851
        %861 = vmatprep.subr.mxu0 0.0
        %862 = vmatpush1.msra.mxu0 0.0
        %863 = vmatprep.subr.mxu0 0.0
        %864 = vmatpush1.msra.mxu0 0.0
        %865 = vmatprep.subr.mxu0 0.0
        %866 = vmatpush1.msra.mxu0 0.0
        %867 = vmatprep.subr.mxu0 0.0
        %868 = vmatpush1.msra.mxu0 0.0
        %869 = vmatprep.subr.mxu0 0.0
        %870 = vmatpush1.msra.mxu0 0.0
        %871 = vmatprep.subr.mxu0 0.0
        %872 = vmatpush1.msra.mxu0 0.0
        %873 = vmatprep.subr.mxu0 0.0
        %874 = vmatpush1.msra.mxu0 0.0
        %875 = vmatprep.subr.mxu0 0.0
        %876 = vmatpush1.msra.mxu0 0.0
        %877 = vmatprep.subr.mxu0 0.0
        %878 = vmatpush1.msra.mxu0 0.0
        %879 = vmatprep.subr.mxu0 0.0
        %880 = vmatpush1.msra.mxu0 0.0
        %881 = vmatprep.subr.mxu0 0.0
        %882 = vmatpush1.msra.mxu0 0.0
        %883 = vmatprep.subr.mxu0 0.0
        %884 = vmatpush1.msra.mxu0 0.0
        %885 = vmatprep.subr.mxu0 0.0
        %886 = vmatpush1.msra.mxu0 0.0
        %887 = vmatprep.subr.mxu0 0.0
        %888 = vmatpush1.msra.mxu0 0.0
        %889 = vmatprep.subr.mxu0 0.0
        %890 = vmatpush1.msra.mxu0 0.0
        %891 = vmatprep.subr.mxu0 0.0
        %892 = vmatpush1.msra.mxu0 0.0
        %893 = vmatprep.subr.mxu0 0.0
        %894 = vmatpush1.msra.mxu0 0.0
        %895 = vmatprep.subr.mxu0 0.0
        %896 = vmatpush1.msra.mxu0 0.0
        %897 = vmatprep.subr.mxu0 0.0
        %898 = vmatpush1.msra.mxu0 0.0
        %899 = vmatprep.subr.mxu0 0.0
        %900 = vmatpush1.msra.mxu0 0.0
        %901 = vmatprep.subr.mxu0 0.0
        %902 = vmatpush1.msra.mxu0 0.0
        %903 = vmatprep.subr.mxu0 0.0
        %904 = vmatpush1.msra.mxu0 0.0
        %905 = vmatprep.subr.mxu0 0.0
        %906 = vmatpush1.msra.mxu0 0.0
        %907 = vmatprep.subr.mxu0 0.0
        %908 = vmatpush1.msra.mxu0 0.0
        %909 = vmatprep.subr.mxu0 0.0
        %910 = vmatpush1.msra.mxu0 0.0
        %911 = vmatprep.subr.mxu0 0.0
        %912 = vmatpush1.msra.mxu0 0.0
        %913 = vmatprep.subr.mxu0 0.0
        %914 = vmatpush1.msra.mxu0 0.0
        %915 = vmatprep.subr.mxu0 0.0
        %916 = vmatpush1.msra.mxu0 0.0
        %917 = vmatprep.subr.mxu0 0.0
        %918 = vmatpush1.msra.mxu0 0.0
        %919 = vmatprep.subr.mxu0 0.0
        %920 = vmatpush1.msra.mxu0 0.0
        %921 = vmatprep.subr.mxu0 0.0
        %922 = vmatpush1.msra.mxu0 0.0
        %923 = vmatprep.mubr.f32.mxu0 0.0
        %924 = vmatmul.mubr.f32.gmra.mrb[0].mxu0 %v854
        %v925 = vpop.f32.mrb[0].mxu0
        %v926 = vadd.f32 0.0, %v925
        %v927 = vpop.f32.mrb[0].mxu0
        %928 = vmatprep.mubr.f32.mxu0 0.0
        %929 = vmatmul.mubr.f32.gmra.mrb[0].mxu0 %v857
        %v930 = vpop.f32.mrb[0].mxu0
        %v931 = vadd.f32 0.0, %v930
        %v932 = vpop.f32.mrb[0].mxu0
        %933 = vdwg.mxu0
        %s934 = scalar_lea.vmem %s431, 8 [#allocation13]
        %935 = vst.msk [vmem:[%s934] sm:$0xff] %vm542, %v848
        %937 = vrot.lane.b32.xlu0 %v926, 8
        %v938 = vpop.permute.xlu0 %937
        %vm940 = vcmask 130112
        %941 = vst.msk [vmem:[#allocation2] sm:$0xff] %vm940, %v938
        %s942 = scalar_lea.vmem %s431, 24 [#allocation13]
        %943 = vst.msk [vmem:[%s942] sm:$0xff] %vm542, %v849
        %945 = vrot.lane.b32.xlu0 %v931, 24
        %v946 = vpop.permute.xlu0 %945
        %vm948 = vcmask 261312
        %949 = vst.msk [vmem:[#allocation2] sm:$0xff] %vm948, %v946
        %v950 = vld [vmem:[#allocation2] sm:$0xff]
        %v951 = vld [vmem:[#allocation11] sm:$0xff]
        %v952 = vld [vmem:[#allocation11 + $0x8] sm:$0xff]
        %v953 = vld [vmem:[#allocation11 + $0x10] sm:$0xff]
        %v954 = vld [vmem:[#allocation11 + $0x18] sm:$0xff]
        %v955 = vld [vmem:[%s6] sm:$0x1]
        %v957 = vlaneseq
        %v958 = vshrl.u32 %v957, 7
        %v959 = vsub.s32 0, %v958
        %v960 = vrot.slane %v955, %v959
        %v963 = vsel %vm446, %v950, 0
        %965 = vmatprep.subr.mxu0 0.0
        %966 = vmatpush1.msra.mxu0 %v951
        %967 = vmatprep.subr.mxu0 0.0
        %968 = vmatpush1.msra.mxu0 %v952
        %969 = vmatprep.subr.mxu0 0.0
        %970 = vmatpush1.msra.mxu0 %v953
        %971 = vmatprep.subr.mxu0 0.0
        %972 = vmatpush1.msra.mxu0 %v954
        %973 = vmatprep.subr.mxu0 0.0
        %974 = vmatpush1.msra.mxu0 0.0
        %975 = vmatprep.subr.mxu0 0.0
        %976 = vmatpush1.msra.mxu0 0.0
        %977 = vmatprep.subr.mxu0 0.0
        %978 = vmatpush1.msra.mxu0 0.0
        %979 = vmatprep.subr.mxu0 0.0
        %980 = vmatpush1.msra.mxu0 0.0
        %981 = vmatprep.subr.mxu0 0.0
        %982 = vmatpush1.msra.mxu0 0.0
        %983 = vmatprep.subr.mxu0 0.0
        %984 = vmatpush1.msra.mxu0 0.0
        %985 = vmatprep.subr.mxu0 0.0
        %986 = vmatpush1.msra.mxu0 0.0
        %987 = vmatprep.subr.mxu0 0.0
        %988 = vmatpush1.msra.mxu0 0.0
        %989 = vmatprep.subr.mxu0 0.0
        %990 = vmatpush1.msra.mxu0 0.0
        %991 = vmatprep.subr.mxu0 0.0
        %992 = vmatpush1.msra.mxu0 0.0
        %993 = vmatprep.subr.mxu0 0.0
        %994 = vmatpush1.msra.mxu0 0.0
        %995 = vmatprep.subr.mxu0 0.0
        %996 = vmatpush1.msra.mxu0 0.0
        %997 = vmatprep.subr.mxu0 0.0
        %998 = vmatpush1.msra.mxu0 0.0
        %999 = vmatprep.subr.mxu0 0.0
        %1000 = vmatpush1.msra.mxu0 0.0
        %1001 = vmatprep.subr.mxu0 0.0
        %1002 = vmatpush1.msra.mxu0 0.0
        %1003 = vmatprep.subr.mxu0 0.0
        %1004 = vmatpush1.msra.mxu0 0.0
        %1005 = vmatprep.subr.mxu0 0.0
        %1006 = vmatpush1.msra.mxu0 0.0
        %1007 = vmatprep.subr.mxu0 0.0
        %1008 = vmatpush1.msra.mxu0 0.0
        %1009 = vmatprep.subr.mxu0 0.0
        %1010 = vmatpush1.msra.mxu0 0.0
        %1011 = vmatprep.subr.mxu0 0.0
        %1012 = vmatpush1.msra.mxu0 0.0
        %1013 = vmatprep.subr.mxu0 0.0
        %1014 = vmatpush1.msra.mxu0 0.0
        %1015 = vmatprep.subr.mxu0 0.0
        %1016 = vmatpush1.msra.mxu0 0.0
        %1017 = vmatprep.subr.mxu0 0.0
        %1018 = vmatpush1.msra.mxu0 0.0
        %1019 = vmatprep.subr.mxu0 0.0
        %1020 = vmatpush1.msra.mxu0 0.0
        %1021 = vmatprep.subr.mxu0 0.0
        %1022 = vmatpush1.msra.mxu0 0.0
        %1023 = vmatprep.subr.mxu0 0.0
        %1024 = vmatpush1.msra.mxu0 0.0
        %1025 = vmatprep.subr.mxu0 0.0
        %1026 = vmatpush1.msra.mxu0 0.0
        %1027 = vmatprep.subr.mxu0 0.0
        %1028 = vmatpush1.msra.mxu0 0.0
        %1029 = vmatprep.mubr.f32.mxu0 0.0
        %1030 = vmatmul.mubr.f32.gmra.mrb[0].mxu0 %v963
        %v1031 = vpop.f32.mrb[0].mxu0
        %v1032 = vadd.f32 %v960, %v1031
        %v1033 = vpop.f32.mrb[0].mxu0
        %1034 = vdwg.mxu0
        %1035 = vst.msk [vmem:[%s424] sm:$0xff] %vm446, %v1032
        %s1036 = sand.u32 %s203, 1
        %s1037 = scalar_lea.sflag [#allocation5], %s1036
        %s1038 = sand.u32 %s203, 1
        %s1039 = smul.addr %s1038, 8
        %s1040 = scalar_lea.vmem [#allocation12], %s1039
        %s1041 = sand.u32 %s229, 1
        %s1042 = scalar_lea.sflag [#allocation14], %s1041
        %s1043 = sand.u32 %s229, 1
        %s1044 = smul.addr %s1043, 32
        %s1045 = scalar_lea.vmem [#allocation13], %s1044
        // Predicated region
        $region69: #{tpu_custom_call.1} parent=47 // pred_check
          %p1046 = pneg %p213
        $region70: #{tpu_custom_call.1} parent=47 // pred_check_branch
          %1048 = sbr.rel (%p1046) target = $region72
        $region71: #{tpu_custom_call.1} parent=47 // pred_region
          %s1050 = ssub.s32 128, 128
          %1051 = vsyncadd %s1037, %s1050
          %s1052 = smul.addr %s33, 128
          %s1053 = scalar_lea.hbm %s7, %s1052
          %s1055 = sshll.u32 %s1040, 4
          %s1056 = int_to_ptr.vmem [resolvable:$true] %s1055
          %1058 = dma.vmem_to_hbm [thread:$0]  %s1056, 128, %s1053, %s1037
        $region72: #{tpu_custom_call.1} parent=47 // pred_fallthru
          _
        // Predicated region
        $region73: #{tpu_custom_call.1} parent=47 // pred_check
          %p1059 = pneg %p239
        $region74: #{tpu_custom_call.1} parent=47 // pred_check_branch
          %1061 = sbr.rel (%p1059) target = $region76
        $region75: #{tpu_custom_call.1} parent=47 // pred_region
          %s1063 = ssub.s32 512, 512
          %1064 = vsyncadd %s1042, %s1063
          %s1065 = smul.addr %s33, 4
          %s1066 = smul.addr %s1065, 128
          %s1067 = scalar_lea.hbm %s8, %s1066
          %s1068 = sshll.u32 %s1045, 4
          %s1069 = int_to_ptr.vmem [resolvable:$true] %s1068
          %1074 = dma.vmem_to_hbm [thread:$0]  %s1069, 512, %s1067, %s1042, 128, 128, 8
        $region76: #{tpu_custom_call.1} parent=47 // pred_fallthru
          _
      $region48: #{tpu_custom_call.1} parent=5 // pred_fallthru
        _
      %p1075 = scmp.le.s32.totalorder 2, %s28
      // Predicated region
      $region77: #{tpu_custom_call.1} parent=5 // pred_check
        %p1076 = pneg %p1075
      $region78: #{tpu_custom_call.1} parent=5 // pred_check_branch
        %1078 = sbr.rel (%p1076) target = $region80
      $region79: #{tpu_custom_call.1} parent=5 // pred_region
        %s1079 = ssub.s32 %s28, 2
        // Predicated region
        $region81: #{tpu_custom_call.1} parent=79 // pred_check
          %p1080 = pneg %p219
        $region82: #{tpu_custom_call.1} parent=79 // pred_check_branch
          %1082 = sbr.rel (%p1080) target = $region84
        $region83: #{tpu_custom_call.1} parent=79 // pred_region
          %s1083 = sand.u32 %s204, 1
          %s1084 = scalar_lea.sflag [#allocation5], %s1083
          %s1085 = sand.u32 %s204, 1
          %s1086 = smul.addr %s1085, 8
          %s1087 = scalar_lea.vmem [#allocation12], %s1086
          %1088 = dma.done %s1084, 128
        $region84: #{tpu_custom_call.1} parent=79 // pred_fallthru
          _
        // Predicated region
        $region85: #{tpu_custom_call.1} parent=79 // pred_check
          %p1089 = pneg %p245
        $region86: #{tpu_custom_call.1} parent=79 // pred_check_branch
          %1091 = sbr.rel (%p1089) target = $region88
        $region87: #{tpu_custom_call.1} parent=79 // pred_region
          %s1092 = sand.u32 %s230, 1
          %s1093 = scalar_lea.sflag [#allocation14], %s1092
          %s1094 = sand.u32 %s230, 1
          %s1095 = smul.addr %s1094, 32
          %s1096 = scalar_lea.vmem [#allocation13], %s1095
          %1097 = dma.done %s1093, 512
        $region88: #{tpu_custom_call.1} parent=79 // pred_fallthru
          _
      $region80: #{tpu_custom_call.1} parent=5 // pred_fallthru
        _
    $region6: #{tpu_custom_call.1} parent=1 // loop_footer
      %s32 = sadd.s32 1, %s28
    $region7: #{tpu_custom_call.1} parent=1 // loop_footer_branch
      %27 = sbr.rel target = $region3
    $region8: #{tpu_custom_call.1} parent=1 // loop_exit
      _
    %1098 = vsyncpa [#allocation4], 1
    %s1099 = scalar_lea.sflag [#allocation4], 1
    %1100 = vsyncpa %s1099, 1
    %1101 = vsyncpa [#allocation7], 1
    %s1102 = scalar_lea.sflag [#allocation7], 1
    %1103 = vsyncpa %s1102, 1
    %1104 = vsyncpa [#allocation10], 1
    %1105 = vsyncpa [#allocation5], 1
    %s1106 = scalar_lea.sflag [#allocation5], 1
    %1107 = vsyncpa %s1106, 1
    %1108 = vsyncpa [#allocation14], 1
    %s1109 = scalar_lea.sflag [#allocation14], 1
    %1110 = vsyncpa %s1109, 1

</llo_original>
